<compile_context>
chip_gen: v7x
topology: tpu7x:2x2x1
jax: 0.10.0
libtpu: 0.0.40
codegen_flags: <defaults>
</compile_context>

<pallas_src>
import math

import jax
import jax.numpy as jnp
from jax.experimental import pallas as pl
from jax.experimental.pallas import tpu as pltpu

BF16, F32 = 2, 4


def _round_up(x, m):
    return ((x + m - 1) // m) * m


def _pick_th(H, cap):
    """Largest divisor of H that is a multiple of 128 and <= cap."""
    start = max(128, (min(cap, H) // 128) * 128)
    for d in range(start, 127, -128):
        if H % d == 0:
            return d
    return 128  # H is asserted to be a multiple of 128, so 128 always divides


def _tpu_vmem_bytes():
    try:
        return int(pltpu.get_tpu_info().vmem_capacity_bytes)
    except Exception:
        return 64 * 1024 * 1024  # conservative default (v7x-sized VMEM)


# --------------------------------------------------------------------------
# Kernels
# --------------------------------------------------------------------------
def _resident_kernel(x_ref, w1_ref, b1_ref, w2_ref, b2_ref, o_ref):
    """Full weights VMEM-resident; one row tile per grid step.

    x_ref: (tm, E) bf16   w1_ref: (E, H) bf16   b1_ref: (1, H) f32
    w2_ref: (H, E) bf16   b2_ref: (1, E) f32    o_ref : (tm, E) f32
    """
    h = jnp.dot(x_ref[...], w1_ref[...], preferred_element_type=jnp.float32)
    h = jnp.maximum(h + b1_ref[...], 0.0)
    o_ref[...] = (jnp.dot(h.astype(w2_ref.dtype), w2_ref[...],
                          preferred_element_type=jnp.float32)
                  + b2_ref[...]).astype(o_ref.dtype)


def _make_chunked_kernel(th):
    """2-D grid (row tile i, hidden chunk k); accumulate directly into o_ref."""

    def kernel(x_ref, w1_ref, b1_ref, w2_ref, b2_ref, o_ref):
        k = pl.program_id(1)

        @pl.when(k == 0)
        def _init():
            # Seed the resident output tile with the output bias (added once).
            o_ref[...] = jnp.broadcast_to(b2_ref[...], o_ref.shape)

        # Hidden chunk: bf16 MXU matmul, f32 accumulation, bias + ReLU in f32.
        h = jnp.dot(x_ref[...], w1_ref[...], preferred_element_type=jnp.float32)
        off = pl.multiple_of(k * th, 128)
        h = jnp.maximum(h + b1_ref[:, pl.ds(off, th)], 0.0)

        # Project back to E and accumulate across hidden chunks in the output
        # tile itself (out BlockSpec index is constant along k, so it stays in
        # VMEM for the whole reduction).
        o_ref[...] += jnp.dot(h.astype(w2_ref.dtype), w2_ref[...],
                              preferred_element_type=jnp.float32)

    return kernel


# --------------------------------------------------------------------------
# VMEM estimates
# --------------------------------------------------------------------------
def _est_resident(tm, E, H):
    return (2 * tm * E * BF16            # x tile (double-buffered)
            + 2 * E * H * BF16           # W1 (conservatively count 2 buffers)
            + 2 * H * E * BF16           # W2
            + 2 * H * F32 + 2 * E * F32  # b1, b2
            + 2 * tm * E * F32           # out tile (double-buffered)
            + tm * H * F32)              # h intermediate (compiler temps)


def _est_chunked(tm, th, E, H):
    return (2 * tm * E * BF16
            + 2 * E * th * BF16
            + 2 * th * E * BF16
            + 2 * H * F32 + 2 * E * F32
            + 2 * tm * E * F32
            + tm * th * F32)


# --------------------------------------------------------------------------
# Wrapper
# --------------------------------------------------------------------------
def prepare_expert_params(w1, b1, w2, b2):
    """One-off operand prep (do this OUTSIDE the hot path): bf16 weights,
    f32 row-vector biases."""
    return (w1.astype(jnp.bfloat16),
            b1.reshape(1, -1).astype(jnp.float32),
            w2.astype(jnp.bfloat16),
            b2.reshape(1, -1).astype(jnp.float32))


def expert_forward(x, w1, b1, w2, b2):
    """x: (batch, seq, n_embed). w1/w2 ideally already bf16 (see
    prepare_expert_params); b1/b2 (1,H)/(1,E) f32. Returns x.shape, x.dtype."""
    B, T, E = x.shape
    H = w1.shape[1]
    M = B * T

    assert E % 128 == 0, "n_embed must be a multiple of 128 (TPU lane width)"
    assert H % 128 == 0, "hidden dim must be a multiple of 128"

    # Cast only if the caller did not pre-prepare (no-op for bf16 weights).
    w1 = w1 if w1.dtype == jnp.bfloat16 else w1.astype(jnp.bfloat16)
    w2 = w2 if w2.dtype == jnp.bfloat16 else w2.astype(jnp.bfloat16)
    b1_2d = b1.reshape(1, H).astype(jnp.float32)
    b2_2d = b2.reshape(1, E).astype(jnp.float32)

    # ---- generation-aware budgets & tiles -----------------------------------
    vmem_cap = _tpu_vmem_bytes()
    big_vmem = vmem_cap >= 100 * 1024 * 1024          # v5e/v6e (128 MiB)
    budget = int(0.70 * vmem_cap)                     # headroom for compiler scratch
    vmem_limit_cap = 100 * 1024 * 1024 if big_vmem else 48 * 1024 * 1024

    tm_target = 512 if big_vmem else 256
    th_cap = 1024 if big_vmem else 512

    # Row tile: never below 128 (MXU M-dim feed), multiple of 128.
    tm = min(tm_target, _round_up(M, 128))

    # ---- path selection ------------------------------------------------------
    est = _est_resident(tm, E, H)
    resident = est <= budget

    if not resident:
        th = _pick_th(H, th_cap)
        # Shrink tiles until the chunked estimate fits the budget.
        while _est_chunked(tm, th, E, H) > budget and (th > 128 or tm > 128):
            if th > 128:
                th = _pick_th(H, th - 128)
            else:
                tm = max(128, ((tm // 2) // 128) * 128)
        est = _est_chunked(tm, th, E, H)

    M_pad = _round_up(M, tm)

    # ---- operand prep --------------------------------------------------------
    out_dtype = x.dtype
    x2d = x.reshape(M, E)
    if M_pad != M:
        x2d = jnp.pad(x2d, ((0, M_pad - M), (0, 0)))
    x2d = x2d.astype(jnp.bfloat16)

    vmem_limit = int(min(vmem_limit_cap, max(32 * 1024 * 1024, 1.25 * est)))

    weight_bytes = (E * H + H * E) * BF16
    n_row_tiles = M_pad // tm

    if resident:
        grid = (n_row_tiles,)
        in_specs = [
            pl.BlockSpec((tm, E), lambda i: (i, 0)),   # x row tile
            pl.BlockSpec((E, H), lambda i: (0, 0)),    # W1 (resident)
            pl.BlockSpec((1, H), lambda i: (0, 0)),    # b1 (resident)
            pl.BlockSpec((H, E), lambda i: (0, 0)),    # W2 (resident)
            pl.BlockSpec((1, E), lambda i: (0, 0)),    # b2 (resident)
        ]
        out_specs = pl.BlockSpec((tm, E), lambda i: (i, 0))
        kernel = _resident_kernel
        dim_sem = ("parallel",)
        bytes_accessed = (M_pad * E * BF16 + weight_bytes
                          + H * F32 + E * F32 + M_pad * E * F32)
    else:
        grid = (n_row_tiles, H // th)
        in_specs = [
            pl.BlockSpec((tm, E), lambda i, k: (i, 0)),   # x row tile
            pl.BlockSpec((E, th), lambda i, k: (0, k)),   # W1 hidden chunk
            pl.BlockSpec((1, H), lambda i, k: (0, 0)),    # b1 full width (1 DMA / row tile)
            pl.BlockSpec((th, E), lambda i, k: (k, 0)),   # W2 hidden chunk
            pl.BlockSpec((1, E), lambda i, k: (0, 0)),    # b2 (constant)
        ]
        out_specs = pl.BlockSpec((tm, E), lambda i, k: (i, 0))
        kernel = _make_chunked_kernel(th)
        dim_sem = ("parallel", "arbitrary")
        # Weights are restreamed once per row tile under this grid.
        bytes_accessed = (M_pad * E * BF16 + n_row_tiles * weight_bytes
                          + H * F32 + E * F32 + M_pad * E * F32)

    cost = pl.CostEstimate(flops=4 * M_pad * E * H,
                           transcendentals=0,
                           bytes_accessed=int(bytes_accessed))

    out2d = pl.pallas_call(
        kernel,
        out_shape=jax.ShapeDtypeStruct((M_pad, E), jnp.float32),
        grid_spec=pltpu.PrefetchScalarGridSpec(
            num_scalar_prefetch=0,
            grid=grid,
            in_specs=in_specs,
            out_specs=out_specs,
        ),
        compiler_params=pltpu.CompilerParams(
            dimension_semantics=dim_sem,
            vmem_limit_bytes=vmem_limit),
        cost_estimate=cost,
    )(x2d, w1, b1_2d, w2, b2_2d)

    return out2d[:M].astype(out_dtype).reshape(B, T, E)


def init_expert_params(key, n_embed):
    """Deterministic init mimicking PyTorch nn.Linear defaults
    (uniform(-1/sqrt(fan_in), 1/sqrt(fan_in)) for weights and biases)."""
    hidden = 4 * n_embed
    k1, k2, k3, k4 = jax.random.split(key, 4)
    bound1 = 1.0 / math.sqrt(n_embed)
    bound2 = 1.0 / math.sqrt(hidden)
    # Stored as (in_features, out_features) for row-major matmul in the kernel.
    w1 = jax.random.uniform(k1, (n_embed, hidden), jnp.float32, -bound1, bound1)
    b1 = jax.random.uniform(k2, (hidden,), jnp.float32, -bound1, bound1)
    w2 = jax.random.uniform(k3, (hidden, n_embed), jnp.float32, -bound2, bound2)
    b2 = jax.random.uniform(k4, (n_embed,), jnp.float32, -bound2, bound2)
    return w1, b1, w2, b2


if __name__ == "__main__":
    n_embed = 128   # matches module global
    batch, seq = 2, 8

    key = jax.random.PRNGKey(0)
    kx, kp = jax.random.split(key)
    x = jax.random.normal(kx, (batch, seq, n_embed), jnp.float32)
    w1, b1, w2, b2 = init_expert_params(kp, n_embed)

    # One-off bf16 prep of the weights (kept out of the per-call hot path).
    w1_b, b1_p, w2_b, b2_p = prepare_expert_params(w1, b1, w2, b2)

    out = expert_forward(x, w1_b, b1_p, w2_b, b2_p)
    out = jax.block_until_ready(out)

    # Cross-check against plain-JAX f32 reference (eval-mode dropout = identity).
    # Tolerance loosened for bf16 MXU inputs (f32 accumulation).
    ref = jnp.maximum(x @ w1 + b1, 0.0) @ w2 + b2
    assert out.shape == (batch, seq, n_embed)
    assert jnp.allclose(out, ref, atol=5e-2, rtol=5e-2), (
        float(jnp.max(jnp.abs(out - ref))))

    print("KERNEL_OK")
</pallas_src>

<mosaic_0001>
module attributes {stable_mosaic.version = 11 : i64} {
  func.func @_resident_kernel(%arg0: i32, %arg1: memref<128x128xbf16, #tpu.memory_space<vmem>>, %arg2: memref<128x512xbf16, #tpu.memory_space<vmem>>, %arg3: memref<1x512xf32, #tpu.memory_space<vmem>>, %arg4: memref<512x128xbf16, #tpu.memory_space<vmem>>, %arg5: memref<1x128xf32, #tpu.memory_space<vmem>>, %arg6: memref<128x128xf32, #tpu.memory_space<vmem>>) attributes {dimension_semantics = [#tpu.dimension_semantics<parallel>], iteration_bounds = array<i64: 1>, scalar_prefetch = 0 : i64, scratch_operands = 0 : i64, tpu.core_type = #tpu.core_type<tc>, window_params = [{transform_indices = @transform_0, window_bounds = array<i64: 128, 128>}, {pipeline_mode = #tpu.pipeline_mode<synchronous>, transform_indices = @transform_1, window_bounds = array<i64: 128, 512>}, {pipeline_mode = #tpu.pipeline_mode<synchronous>, transform_indices = @transform_2, window_bounds = array<i64: 1, 512>}, {pipeline_mode = #tpu.pipeline_mode<synchronous>, transform_indices = @transform_3, window_bounds = array<i64: 512, 128>}, {pipeline_mode = #tpu.pipeline_mode<synchronous>, transform_indices = @transform_4, window_bounds = array<i64: 1, 128>}, {transform_indices = @transform_5, window_bounds = array<i64: 128, 128>}]} {
    %c0 = arith.constant 0 : index
    %c0_0 = arith.constant 0 : index
    %0 = vector.load %arg1[%c0, %c0_0] : memref<128x128xbf16, #tpu.memory_space<vmem>>, vector<128x128xbf16>
    %c0_1 = arith.constant 0 : index
    %c0_2 = arith.constant 0 : index
    %1 = vector.load %arg2[%c0_1, %c0_2] : memref<128x512xbf16, #tpu.memory_space<vmem>>, vector<128x512xbf16>
    %cst = arith.constant dense<0.000000e+00> : vector<128x512xf32>
    %2 = tpu.matmul %0, %1, %cst {dimension_numbers = #tpu.dot_dimension_numbers<[1], [0], [0], [1], [0, 0, 1, 1], [], []>} : vector<128x128xbf16>, vector<128x512xbf16>, vector<128x512xf32> -> vector<128x512xf32>
    %c0_3 = arith.constant 0 : index
    %c0_4 = arith.constant 0 : index
    %3 = vector.load %arg3[%c0_3, %c0_4] : memref<1x512xf32, #tpu.memory_space<vmem>>, vector<1x512xf32>
    %4 = vector.broadcast %3 : vector<1x512xf32> to vector<128x512xf32>
    %5 = arith.addf %2, %4 : vector<128x512xf32>
    %cst_5 = arith.constant 0.000000e+00 : f32
    %6 = vector.broadcast %cst_5 : f32 to vector<128x512xf32>
    %7 = arith.maximumf %5, %6 : vector<128x512xf32>
    %8 = arith.truncf %7 : vector<128x512xf32> to vector<128x512xbf16>
    %c0_6 = arith.constant 0 : index
    %c0_7 = arith.constant 0 : index
    %9 = vector.load %arg4[%c0_6, %c0_7] : memref<512x128xbf16, #tpu.memory_space<vmem>>, vector<512x128xbf16>
    %cst_8 = arith.constant dense<0.000000e+00> : vector<128x128xf32>
    %10 = tpu.matmul %8, %9, %cst_8 {dimension_numbers = #tpu.dot_dimension_numbers<[1], [0], [0], [1], [0, 0, 1, 1], [], []>} : vector<128x512xbf16>, vector<512x128xbf16>, vector<128x128xf32> -> vector<128x128xf32>
    %c0_9 = arith.constant 0 : index
    %c0_10 = arith.constant 0 : index
    %11 = vector.load %arg5[%c0_9, %c0_10] : memref<1x128xf32, #tpu.memory_space<vmem>>, vector<1x128xf32>
    %12 = vector.broadcast %11 : vector<1x128xf32> to vector<128x128xf32>
    %13 = arith.addf %10, %12 : vector<128x128xf32>
    %c0_11 = arith.constant 0 : index
    %c0_12 = arith.constant 0 : index
    %14 = vector.load %arg6[%c0_11, %c0_12] : memref<128x128xf32, #tpu.memory_space<vmem>>, vector<128x128xf32>
    tpu.vector_store %arg6[%c0_11, %c0_12], %13 {strides = array<i32>} : memref<128x128xf32, #tpu.memory_space<vmem>>, vector<128x128xf32>,
    return
  }
  func.func @transform_0(%arg0: i32) -> (i32, i32) {
    %c0_i32 = arith.constant 0 : i32
    %c0_i32_0 = arith.constant 0 : i32
    return %arg0, %c0_i32 : i32, i32
  }
  func.func @transform_1(%arg0: i32) -> (i32, i32) {
    %c0_i32 = arith.constant 0 : i32
    %c0_i32_0 = arith.constant 0 : i32
    %c0_i32_1 = arith.constant 0 : i32
    return %c0_i32, %c0_i32_0 : i32, i32
  }
  func.func @transform_2(%arg0: i32) -> (i32, i32) {
    %c0_i32 = arith.constant 0 : i32
    %c0_i32_0 = arith.constant 0 : i32
    %c0_i32_1 = arith.constant 0 : i32
    return %c0_i32, %c0_i32_0 : i32, i32
  }
  func.func @transform_3(%arg0: i32) -> (i32, i32) {
    %c0_i32 = arith.constant 0 : i32
    %c0_i32_0 = arith.constant 0 : i32
    %c0_i32_1 = arith.constant 0 : i32
    return %c0_i32, %c0_i32_0 : i32, i32
  }
  func.func @transform_4(%arg0: i32) -> (i32, i32) {
    %c0_i32 = arith.constant 0 : i32
    %c0_i32_0 = arith.constant 0 : i32
    %c0_i32_1 = arith.constant 0 : i32
    return %c0_i32, %c0_i32_0 : i32, i32
  }
  func.func @transform_5(%arg0: i32) -> (i32, i32) {
    %c0_i32 = arith.constant 0 : i32
    %c0_i32_0 = arith.constant 0 : i32
    return %arg0, %c0_i32 : i32, i32
  }
}

</mosaic_0001>

<llo_original>
// kernel: tpu_custom_call.1
$region0: #{tpu_custom_call.1}
  #allocation0 [shape = 'u32[]', space=smem, size = 0x4, offset = 0x4, fixed_abs, tag = 'smem constant byte address 0x4 - core index']
  #allocation1 [shape = 'u32[144,128]{1,0:T(1,128)}', space=vmem, size = 0x12000, scoped, tag = 'internal scratch']
  %s0 = inlined_call_operand.hbm [shape: bf16[128,128], index: 0, kind: input, shape index: {}]
  %s1 = inlined_call_operand.hbm [shape: bf16[128,512], index: 1, kind: input, shape index: {}]
  %s2 = inlined_call_operand.vmem [shape: f32[1,512], index: 2, kind: input, shape index: {}]
  %s3 = inlined_call_operand.hbm [shape: bf16[512,128], index: 3, kind: input, shape index: {}]
  %s4 = inlined_call_operand.vmem [shape: f32[1,128], index: 4, kind: input, shape index: {}]
  %s5 = inlined_call_operand.hbm [shape: f32[128,128], index: 5, kind: output, shape index: {}]
  %s6 = sld [smem:[#allocation0]]
  $region42: #{tpu_custom_call.1} parent=0
    _
  %s8 = ssub.s32 1, %s6
  %s9 = scalar_select 0, %s8, %s6
  $region1: #{tpu_custom_call.1} parent=0
    #allocation2 [shape = 'u8[32768]{0}', space=vmem, size = 0x8000, scoped, tag = 'input window, operand 0, single buffered']
    #allocation3 [shape = 's32[1]{0}', space=sflag, size = 0x4, scoped, tag = 'scoped memory for tpu_custom_call.1']
    #allocation4 [shape = 's32[1]{0}', space=sflag, size = 0x4, scoped, tag = 'scoped memory for tpu_custom_call.1']
    #allocation5 [shape = 'u8[131072]{0}', space=vmem, size = 0x20000, scoped, tag = 'input window, operand 1, single buffered']
    #allocation6 [shape = 's32[1]{0}', space=sflag, size = 0x4, scoped, tag = 'scoped memory for tpu_custom_call.1']
    #allocation7 [shape = 'u8[131072]{0}', space=vmem, size = 0x20000, scoped, tag = 'input window, operand 3, single buffered']
    #allocation8 [shape = 'u8[65536]{0}', space=vmem, size = 0x10000, scoped, tag = 'output window, operand 0, single buffered']
    %10 = vsyncpa [#allocation3], 0
    %11 = vsyncpa [#allocation6], 0
    %12 = vsyncpa [#allocation4], 0
    // Predicated region
    $region2: #{tpu_custom_call.1} parent=1 // pred_check
      _
    $region3: #{tpu_custom_call.1} parent=1 // pred_check_branch
      %14 = sbr.rel (0) target = $region5
    $region4: #{tpu_custom_call.1} parent=1 // pred_region
      %s16 = ssub.s32 1024, 1024
      %17 = vsyncadd [#allocation3], %s16
      %s18 = sshll.u32 [#allocation2], 4
      %s19 = int_to_ptr.vmem [resolvable:$true] %s18
      %24 = dma.hbm_to_vmem [thread:$0]  %s0, 1024, %s19, [#allocation3], 64, 64, 4
    $region5: #{tpu_custom_call.1} parent=1 // pred_fallthru
      _
    // Predicated region
    $region6: #{tpu_custom_call.1} parent=1 // pred_check
      _
    $region7: #{tpu_custom_call.1} parent=1 // pred_check_branch
      %26 = sbr.rel (0) target = $region9
    $region8: #{tpu_custom_call.1} parent=1 // pred_region
      %s28 = ssub.s32 4096, 4096
      %29 = vsyncadd [#allocation6], %s28
      %s30 = sshll.u32 [#allocation5], 4
      %s31 = int_to_ptr.vmem [resolvable:$true] %s30
      %36 = dma.hbm_to_vmem [thread:$0]  %s1, 4096, %s31, [#allocation6], 256, 256, 16
    $region9: #{tpu_custom_call.1} parent=1 // pred_fallthru
      _
    // Predicated region
    $region10: #{tpu_custom_call.1} parent=1 // pred_check
      _
    $region11: #{tpu_custom_call.1} parent=1 // pred_check_branch
      %38 = sbr.rel (0) target = $region13
    $region12: #{tpu_custom_call.1} parent=1 // pred_region
      _
    $region13: #{tpu_custom_call.1} parent=1 // pred_fallthru
      _
    // Predicated region
    $region14: #{tpu_custom_call.1} parent=1 // pred_check
      _
    $region15: #{tpu_custom_call.1} parent=1 // pred_check_branch
      %40 = sbr.rel (0) target = $region17
    $region16: #{tpu_custom_call.1} parent=1 // pred_region
      %s42 = ssub.s32 4096, 4096
      %43 = vsyncadd [#allocation6], %s42
      %s44 = sshll.u32 [#allocation7], 4
      %s45 = int_to_ptr.vmem [resolvable:$true] %s44
      %50 = dma.hbm_to_vmem [thread:$0]  %s3, 4096, %s45, [#allocation6], 64, 64, 4
    $region17: #{tpu_custom_call.1} parent=1 // pred_fallthru
      _
    // Predicated region
    $region18: #{tpu_custom_call.1} parent=1 // pred_check
      _
    $region19: #{tpu_custom_call.1} parent=1 // pred_check_branch
      %52 = sbr.rel (0) target = $region21
    $region20: #{tpu_custom_call.1} parent=1 // pred_region
      _
    $region21: #{tpu_custom_call.1} parent=1 // pred_fallthru
      _
    // Predicated region
    $region22: #{tpu_custom_call.1} parent=1 // pred_check
      _
    $region23: #{tpu_custom_call.1} parent=1 // pred_check_branch
      %54 = sbr.rel (0) target = $region25
    $region24: #{tpu_custom_call.1} parent=1 // pred_region
      %55 = dma.done [#allocation3], 1024
    $region25: #{tpu_custom_call.1} parent=1 // pred_fallthru
      _
    // Predicated region
    $region26: #{tpu_custom_call.1} parent=1 // pred_check
      _
    $region27: #{tpu_custom_call.1} parent=1 // pred_check_branch
      %57 = sbr.rel (0) target = $region29
    $region28: #{tpu_custom_call.1} parent=1 // pred_region
      %58 = dma.done [#allocation6], 4096
    $region29: #{tpu_custom_call.1} parent=1 // pred_fallthru
      _
    // Predicated region
    $region30: #{tpu_custom_call.1} parent=1 // pred_check
      _
    $region31: #{tpu_custom_call.1} parent=1 // pred_check_branch
      %60 = sbr.rel (0) target = $region33
    $region32: #{tpu_custom_call.1} parent=1 // pred_region
      %61 = dma.done [#allocation6], 4096
    $region33: #{tpu_custom_call.1} parent=1 // pred_fallthru
      _
    %v63 = vld [vmem:[#allocation2] sm:$0xf]
    %v64 = vld [vmem:[#allocation2 + $0x4] sm:$0xf]
    %v65 = vld [vmem:[#allocation2 + $0x8] sm:$0xf]
    %v66 = vld [vmem:[#allocation2 + $0xc] sm:$0xf]
    %v67 = vld [vmem:[#allocation2 + $0x10] sm:$0xf]
    %v68 = vld [vmem:[#allocation2 + $0x14] sm:$0xf]
    %v69 = vld [vmem:[#allocation2 + $0x18] sm:$0xf]
    %v70 = vld [vmem:[#allocation2 + $0x1c] sm:$0xf]
    %v71 = vld [vmem:[#allocation2 + $0x20] sm:$0xf]
    %v72 = vld [vmem:[#allocation2 + $0x24] sm:$0xf]
    %v73 = vld [vmem:[#allocation2 + $0x28] sm:$0xf]
    %v74 = vld [vmem:[#allocation2 + $0x2c] sm:$0xf]
    %v75 = vld [vmem:[#allocation2 + $0x30] sm:$0xf]
    %v76 = vld [vmem:[#allocation2 + $0x34] sm:$0xf]
    %v77 = vld [vmem:[#allocation2 + $0x38] sm:$0xf]
    %v78 = vld [vmem:[#allocation2 + $0x3c] sm:$0xf]
    %v79 = vld [vmem:[#allocation5] sm:$0xff]
    %v80 = vld [vmem:[#allocation5 + $0x8] sm:$0xff]
    %v81 = vld [vmem:[#allocation5 + $0x10] sm:$0xff]
    %v82 = vld [vmem:[#allocation5 + $0x18] sm:$0xff]
    %v83 = vld [vmem:[#allocation5 + $0x20] sm:$0xff]
    %v84 = vld [vmem:[#allocation5 + $0x28] sm:$0xff]
    %v85 = vld [vmem:[#allocation5 + $0x30] sm:$0xff]
    %v86 = vld [vmem:[#allocation5 + $0x38] sm:$0xff]
    %v87 = vld [vmem:[#allocation5 + $0x40] sm:$0xff]
    %v88 = vld [vmem:[#allocation5 + $0x48] sm:$0xff]
    %v89 = vld [vmem:[#allocation5 + $0x50] sm:$0xff]
    %v90 = vld [vmem:[#allocation5 + $0x58] sm:$0xff]
    %v91 = vld [vmem:[#allocation5 + $0x60] sm:$0xff]
    %v92 = vld [vmem:[#allocation5 + $0x68] sm:$0xff]
    %v93 = vld [vmem:[#allocation5 + $0x70] sm:$0xff]
    %v94 = vld [vmem:[#allocation5 + $0x78] sm:$0xff]
    %v95 = vld [vmem:[#allocation5 + $0x80] sm:$0xff]
    %v96 = vld [vmem:[#allocation5 + $0x88] sm:$0xff]
    %v97 = vld [vmem:[#allocation5 + $0x90] sm:$0xff]
    %v98 = vld [vmem:[#allocation5 + $0x98] sm:$0xff]
    %v99 = vld [vmem:[#allocation5 + $0xa0] sm:$0xff]
    %v100 = vld [vmem:[#allocation5 + $0xa8] sm:$0xff]
    %v101 = vld [vmem:[#allocation5 + $0xb0] sm:$0xff]
    %v102 = vld [vmem:[#allocation5 + $0xb8] sm:$0xff]
    %v103 = vld [vmem:[#allocation5 + $0xc0] sm:$0xff]
    %v104 = vld [vmem:[#allocation5 + $0xc8] sm:$0xff]
    %v105 = vld [vmem:[#allocation5 + $0xd0] sm:$0xff]
    %v106 = vld [vmem:[#allocation5 + $0xd8] sm:$0xff]
    %v107 = vld [vmem:[#allocation5 + $0xe0] sm:$0xff]
    %v108 = vld [vmem:[#allocation5 + $0xe8] sm:$0xff]
    %v109 = vld [vmem:[#allocation5 + $0xf0] sm:$0xff]
    %v110 = vld [vmem:[#allocation5 + $0xf8] sm:$0xff]
    %v111 = vld [vmem:[%s2] sm:$0xf]
    %v113 = vlaneseq
    %v114 = vshrl.u32 %v113, 7
    %v115 = vsub.s32 0, %v114
    %v116 = vrot.slane %v111, %v115
    %v117 = vlaneseq
    %v118 = vshrl.u32 %v117, 7
    %v119 = vsub.s32 1, %v118
    %v120 = vrot.slane %v111, %v119
    %v121 = vlaneseq
    %v122 = vshrl.u32 %v121, 7
    %v123 = vsub.s32 2, %v122
    %v124 = vrot.slane %v111, %v123
    %v125 = vlaneseq
    %v126 = vshrl.u32 %v125, 7
    %v127 = vsub.s32 3, %v126
    %v128 = vrot.slane %v111, %v127
    %v149 = vunpack.c.l.b16 %v63
    %v150 = vunpack.c.l.b16 %v64
    %v151 = vunpack.c.l.b16 %v65
    %v152 = vunpack.c.l.b16 %v66
    %v153 = vunpack.c.l.b16 %v67
    %v154 = vunpack.c.l.b16 %v68
    %v155 = vunpack.c.l.b16 %v69
    %v156 = vunpack.c.l.b16 %v70
    %v157 = vunpack.c.l.b16 %v71
    %v158 = vunpack.c.l.b16 %v72
    %v159 = vunpack.c.l.b16 %v73
    %v160 = vunpack.c.l.b16 %v74
    %v161 = vunpack.c.l.b16 %v75
    %v162 = vunpack.c.l.b16 %v76
    %v163 = vunpack.c.l.b16 %v77
    %v164 = vunpack.c.l.b16 %v78
    %v165 = vpack.c.b16 %v150, %v149
    %v166 = vpack.c.b16 %v152, %v151
    %v167 = vpack.c.b16 %v154, %v153
    %v168 = vpack.c.b16 %v156, %v155
    %v169 = vpack.c.b16 %v158, %v157
    %v170 = vpack.c.b16 %v160, %v159
    %v171 = vpack.c.b16 %v162, %v161
    %v172 = vpack.c.b16 %v164, %v163
    %v213 = vunpack.c.l.b16 %v79
    %v214 = vunpack.c.h.b16 %v79
    %v215 = vunpack.c.l.b16 %v80
    %v216 = vunpack.c.h.b16 %v80
    %v217 = vunpack.c.l.b16 %v81
    %v218 = vunpack.c.h.b16 %v81
    %v219 = vunpack.c.l.b16 %v82
    %v220 = vunpack.c.h.b16 %v82
    %v221 = vunpack.c.l.b16 %v83
    %v222 = vunpack.c.h.b16 %v83
    %v223 = vunpack.c.l.b16 %v84
    %v224 = vunpack.c.h.b16 %v84
    %v225 = vunpack.c.l.b16 %v85
    %v226 = vunpack.c.h.b16 %v85
    %v227 = vunpack.c.l.b16 %v86
    %v228 = vunpack.c.h.b16 %v86
    %v229 = vunpack.c.l.b16 %v87
    %v230 = vunpack.c.h.b16 %v87
    %v231 = vunpack.c.l.b16 %v88
    %v232 = vunpack.c.h.b16 %v88
    %v233 = vunpack.c.l.b16 %v89
    %v234 = vunpack.c.h.b16 %v89
    %v235 = vunpack.c.l.b16 %v90
    %v236 = vunpack.c.h.b16 %v90
    %v237 = vunpack.c.l.b16 %v91
    %v238 = vunpack.c.h.b16 %v91
    %v239 = vunpack.c.l.b16 %v92
    %v240 = vunpack.c.h.b16 %v92
    %v241 = vunpack.c.l.b16 %v93
    %v242 = vunpack.c.h.b16 %v93
    %v243 = vunpack.c.l.b16 %v94
    %v244 = vunpack.c.h.b16 %v94
    %v245 = vunpack.c.l.b16 %v95
    %v246 = vunpack.c.h.b16 %v95
    %v247 = vunpack.c.l.b16 %v96
    %v248 = vunpack.c.h.b16 %v96
    %v249 = vunpack.c.l.b16 %v97
    %v250 = vunpack.c.h.b16 %v97
    %v251 = vunpack.c.l.b16 %v98
    %v252 = vunpack.c.h.b16 %v98
    %v253 = vunpack.c.l.b16 %v99
    %v254 = vunpack.c.h.b16 %v99
    %v255 = vunpack.c.l.b16 %v100
    %v256 = vunpack.c.h.b16 %v100
    %v257 = vunpack.c.l.b16 %v101
    %v258 = vunpack.c.h.b16 %v101
    %v259 = vunpack.c.l.b16 %v102
    %v260 = vunpack.c.h.b16 %v102
    %v261 = vunpack.c.l.b16 %v103
    %v262 = vunpack.c.h.b16 %v103
    %v263 = vunpack.c.l.b16 %v104
    %v264 = vunpack.c.h.b16 %v104
    %v265 = vunpack.c.l.b16 %v105
    %v266 = vunpack.c.h.b16 %v105
    %v267 = vunpack.c.l.b16 %v106
    %v268 = vunpack.c.h.b16 %v106
    %v269 = vunpack.c.l.b16 %v107
    %v270 = vunpack.c.h.b16 %v107
    %v271 = vunpack.c.l.b16 %v108
    %v272 = vunpack.c.h.b16 %v108
    %v273 = vunpack.c.l.b16 %v109
    %v274 = vunpack.c.h.b16 %v109
    %v275 = vunpack.c.l.b16 %v110
    %v276 = vunpack.c.h.b16 %v110
    %v277 = vpack.c.b16 %v217, %v213
    %v278 = vpack.c.b16 %v218, %v214
    %v279 = vpack.c.b16 %v219, %v215
    %v280 = vpack.c.b16 %v220, %v216
    %v281 = vpack.c.b16 %v225, %v221
    %v282 = vpack.c.b16 %v226, %v222
    %v283 = vpack.c.b16 %v227, %v223
    %v284 = vpack.c.b16 %v228, %v224
    %v285 = vpack.c.b16 %v233, %v229
    %v286 = vpack.c.b16 %v234, %v230
    %v287 = vpack.c.b16 %v235, %v231
    %v288 = vpack.c.b16 %v236, %v232
    %v289 = vpack.c.b16 %v241, %v237
    %v290 = vpack.c.b16 %v242, %v238
    %v291 = vpack.c.b16 %v243, %v239
    %v292 = vpack.c.b16 %v244, %v240
    %v293 = vpack.c.b16 %v249, %v245
    %v294 = vpack.c.b16 %v250, %v246
    %v295 = vpack.c.b16 %v251, %v247
    %v296 = vpack.c.b16 %v252, %v248
    %v297 = vpack.c.b16 %v257, %v253
    %v298 = vpack.c.b16 %v258, %v254
    %v299 = vpack.c.b16 %v259, %v255
    %v300 = vpack.c.b16 %v260, %v256
    %v301 = vpack.c.b16 %v265, %v261
    %v302 = vpack.c.b16 %v266, %v262
    %v303 = vpack.c.b16 %v267, %v263
    %v304 = vpack.c.b16 %v268, %v264
    %v305 = vpack.c.b16 %v273, %v269
    %v306 = vpack.c.b16 %v274, %v270
    %v307 = vpack.c.b16 %v275, %v271
    %v308 = vpack.c.b16 %v276, %v272
    %341 = vmatprep.subr.bf16.mxu0 %v278
    %342 = vmatpush1.bf16.msra.mxu0 %v277
    %343 = vmatprep.subr.bf16.mxu0 %v282
    %344 = vmatpush1.bf16.msra.mxu0 %v281
    %345 = vmatprep.subr.bf16.mxu0 %v286
    %346 = vmatpush1.bf16.msra.mxu0 %v285
    %347 = vmatprep.subr.bf16.mxu0 %v290
    %348 = vmatpush1.bf16.msra.mxu0 %v289
    %349 = vmatprep.subr.bf16.mxu0 %v294
    %350 = vmatpush1.bf16.msra.mxu0 %v293
    %351 = vmatprep.subr.bf16.mxu0 %v298
    %352 = vmatpush1.bf16.msra.mxu0 %v297
    %353 = vmatprep.subr.bf16.mxu0 %v302
    %354 = vmatpush1.bf16.msra.mxu0 %v301
    %355 = vmatprep.subr.bf16.mxu0 %v306
    %356 = vmatpush1.bf16.msra.mxu0 %v305
    %357 = vmatprep.subr.bf16.mxu0 0
    %358 = vmatpush1.bf16.msra.mxu0 0
    %359 = vmatprep.subr.bf16.mxu0 0
    %360 = vmatpush1.bf16.msra.mxu0 0
    %361 = vmatprep.subr.bf16.mxu0 0
    %362 = vmatpush1.bf16.msra.mxu0 0
    %363 = vmatprep.subr.bf16.mxu0 0
    %364 = vmatpush1.bf16.msra.mxu0 0
    %365 = vmatprep.subr.bf16.mxu0 0
    %366 = vmatpush1.bf16.msra.mxu0 0
    %367 = vmatprep.subr.bf16.mxu0 0
    %368 = vmatpush1.bf16.msra.mxu0 0
    %369 = vmatprep.subr.bf16.mxu0 0
    %370 = vmatpush1.bf16.msra.mxu0 0
    %371 = vmatprep.subr.bf16.mxu0 0
    %372 = vmatpush1.bf16.msra.mxu0 0
    %373 = vmatprep.mubr.bf16.mxu0 0
    %374 = vmatmul.mubr.bf16.gmra.mrb[0].mxu0 %v165
    %v375 = vpop.f32.mrb[0].mxu0
    %v376 = vadd.f32 %v116, %v375
    %v377 = vpop.f32.mrb[0].mxu0
    %v378 = vadd.f32 %v120, %v377
    %v379 = vpop.f32.mrb[0].mxu0
    %v380 = vadd.f32 %v116, %v379
    %v381 = vpop.f32.mrb[0].mxu0
    %v382 = vadd.f32 %v120, %v381
    %383 = vmatprep.mubr.bf16.mxu0 0
    %384 = vmatmul.mubr.bf16.gmra.mrb[0].mxu0 %v166
    %v385 = vpop.f32.mrb[0].mxu0
    %v386 = vadd.f32 %v116, %v385
    %v387 = vpop.f32.mrb[0].mxu0
    %v388 = vadd.f32 %v120, %v387
    %v389 = vpop.f32.mrb[0].mxu0
    %v390 = vadd.f32 %v116, %v389
    %v391 = vpop.f32.mrb[0].mxu0
    %v392 = vadd.f32 %v120, %v391
    %393 = vmatprep.mubr.bf16.mxu0 0
    %394 = vmatmul.mubr.bf16.gmra.mrb[0].mxu0 %v167
    %v395 = vpop.f32.mrb[0].mxu0
    %v396 = vadd.f32 %v116, %v395
    %v397 = vpop.f32.mrb[0].mxu0
    %v398 = vadd.f32 %v120, %v397
    %v399 = vpop.f32.mrb[0].mxu0
    %v400 = vadd.f32 %v116, %v399
    %v401 = vpop.f32.mrb[0].mxu0
    %v402 = vadd.f32 %v120, %v401
    %403 = vmatprep.mubr.bf16.mxu0 0
    %404 = vmatmul.mubr.bf16.gmra.mrb[0].mxu0 %v168
    %v405 = vpop.f32.mrb[0].mxu0
    %v406 = vadd.f32 %v116, %v405
    %v407 = vpop.f32.mrb[0].mxu0
    %v408 = vadd.f32 %v120, %v407
    %v409 = vpop.f32.mrb[0].mxu0
    %v410 = vadd.f32 %v116, %v409
    %v411 = vpop.f32.mrb[0].mxu0
    %v412 = vadd.f32 %v120, %v411
    %413 = vmatprep.mubr.bf16.mxu0 0
    %414 = vmatmul.mubr.bf16.gmra.mrb[0].mxu0 %v169
    %v415 = vpop.f32.mrb[0].mxu0
    %v416 = vadd.f32 %v116, %v415
    %v417 = vpop.f32.mrb[0].mxu0
    %v418 = vadd.f32 %v120, %v417
    %v419 = vpop.f32.mrb[0].mxu0
    %v420 = vadd.f32 %v116, %v419
    %v421 = vpop.f32.mrb[0].mxu0
    %v422 = vadd.f32 %v120, %v421
    %423 = vmatprep.mubr.bf16.mxu0 0
    %424 = vmatmul.mubr.bf16.gmra.mrb[0].mxu0 %v170
    %v425 = vpop.f32.mrb[0].mxu0
    %v426 = vadd.f32 %v116, %v425
    %v427 = vpop.f32.mrb[0].mxu0
    %v428 = vadd.f32 %v120, %v427
    %v429 = vpop.f32.mrb[0].mxu0
    %v430 = vadd.f32 %v116, %v429
    %v431 = vpop.f32.mrb[0].mxu0
    %v432 = vadd.f32 %v120, %v431
    %433 = vmatprep.mubr.bf16.mxu0 0
    %434 = vmatmul.mubr.bf16.gmra.mrb[0].mxu0 %v171
    %v435 = vpop.f32.mrb[0].mxu0
    %v436 = vadd.f32 %v116, %v435
    %v437 = vpop.f32.mrb[0].mxu0
    %v438 = vadd.f32 %v120, %v437
    %v439 = vpop.f32.mrb[0].mxu0
    %v440 = vadd.f32 %v116, %v439
    %v441 = vpop.f32.mrb[0].mxu0
    %v442 = vadd.f32 %v120, %v441
    %443 = vmatprep.mubr.bf16.mxu0 0
    %444 = vmatmul.mubr.bf16.gmra.mrb[0].mxu0 %v172
    %v445 = vpop.f32.mrb[0].mxu0
    %v446 = vadd.f32 %v116, %v445
    %v447 = vpop.f32.mrb[0].mxu0
    %v448 = vadd.f32 %v120, %v447
    %v449 = vpop.f32.mrb[0].mxu0
    %v450 = vadd.f32 %v116, %v449
    %v451 = vpop.f32.mrb[0].mxu0
    %v452 = vadd.f32 %v120, %v451
    %453 = vdwg.mxu0
    %454 = vmatprep.subr.bf16.mxu0 %v280
    %455 = vmatpush1.bf16.msra.mxu0 %v279
    %456 = vmatprep.subr.bf16.mxu0 %v284
    %457 = vmatpush1.bf16.msra.mxu0 %v283
    %458 = vmatprep.subr.bf16.mxu0 %v288
    %459 = vmatpush1.bf16.msra.mxu0 %v287
    %460 = vmatprep.subr.bf16.mxu0 %v292
    %461 = vmatpush1.bf16.msra.mxu0 %v291
    %462 = vmatprep.subr.bf16.mxu0 %v296
    %463 = vmatpush1.bf16.msra.mxu0 %v295
    %464 = vmatprep.subr.bf16.mxu0 %v300
    %465 = vmatpush1.bf16.msra.mxu0 %v299
    %466 = vmatprep.subr.bf16.mxu0 %v304
    %467 = vmatpush1.bf16.msra.mxu0 %v303
    %468 = vmatprep.subr.bf16.mxu0 %v308
    %469 = vmatpush1.bf16.msra.mxu0 %v307
    %470 = vmatprep.subr.bf16.mxu0 0
    %471 = vmatpush1.bf16.msra.mxu0 0
    %472 = vmatprep.subr.bf16.mxu0 0
    %473 = vmatpush1.bf16.msra.mxu0 0
    %474 = vmatprep.subr.bf16.mxu0 0
    %475 = vmatpush1.bf16.msra.mxu0 0
    %476 = vmatprep.subr.bf16.mxu0 0
    %477 = vmatpush1.bf16.msra.mxu0 0
    %478 = vmatprep.subr.bf16.mxu0 0
    %479 = vmatpush1.bf16.msra.mxu0 0
    %480 = vmatprep.subr.bf16.mxu0 0
    %481 = vmatpush1.bf16.msra.mxu0 0
    %482 = vmatprep.subr.bf16.mxu0 0
    %483 = vmatpush1.bf16.msra.mxu0 0
    %484 = vmatprep.subr.bf16.mxu0 0
    %485 = vmatpush1.bf16.msra.mxu0 0
    %486 = vmatprep.mubr.bf16.mxu0 0
    %487 = vmatmul.mubr.bf16.gmra.mrb[0].mxu0 %v165
    %v488 = vpop.f32.mrb[0].mxu0
    %v489 = vadd.f32 %v124, %v488
    %v490 = vpop.f32.mrb[0].mxu0
    %v491 = vadd.f32 %v128, %v490
    %v492 = vpop.f32.mrb[0].mxu0
    %v493 = vadd.f32 %v124, %v492
    %v494 = vpop.f32.mrb[0].mxu0
    %v495 = vadd.f32 %v128, %v494
    %496 = vmatprep.mubr.bf16.mxu0 0
    %497 = vmatmul.mubr.bf16.gmra.mrb[0].mxu0 %v166
    %v498 = vpop.f32.mrb[0].mxu0
    %v499 = vadd.f32 %v124, %v498
    %v500 = vpop.f32.mrb[0].mxu0
    %v501 = vadd.f32 %v128, %v500
    %v502 = vpop.f32.mrb[0].mxu0
    %v503 = vadd.f32 %v124, %v502
    %v504 = vpop.f32.mrb[0].mxu0
    %v505 = vadd.f32 %v128, %v504
    %506 = vmatprep.mubr.bf16.mxu0 0
    %507 = vmatmul.mubr.bf16.gmra.mrb[0].mxu0 %v167
    %v508 = vpop.f32.mrb[0].mxu0
    %v509 = vadd.f32 %v124, %v508
    %v510 = vpop.f32.mrb[0].mxu0
    %v511 = vadd.f32 %v128, %v510
    %v512 = vpop.f32.mrb[0].mxu0
    %v513 = vadd.f32 %v124, %v512
    %v514 = vpop.f32.mrb[0].mxu0
    %v515 = vadd.f32 %v128, %v514
    %516 = vmatprep.mubr.bf16.mxu0 0
    %517 = vmatmul.mubr.bf16.gmra.mrb[0].mxu0 %v168
    %v518 = vpop.f32.mrb[0].mxu0
    %v519 = vadd.f32 %v124, %v518
    %v520 = vpop.f32.mrb[0].mxu0
    %v521 = vadd.f32 %v128, %v520
    %v522 = vpop.f32.mrb[0].mxu0
    %v523 = vadd.f32 %v124, %v522
    %v524 = vpop.f32.mrb[0].mxu0
    %v525 = vadd.f32 %v128, %v524
    %526 = vmatprep.mubr.bf16.mxu0 0
    %527 = vmatmul.mubr.bf16.gmra.mrb[0].mxu0 %v169
    %v528 = vpop.f32.mrb[0].mxu0
    %v529 = vadd.f32 %v124, %v528
    %v530 = vpop.f32.mrb[0].mxu0
    %v531 = vadd.f32 %v128, %v530
    %v532 = vpop.f32.mrb[0].mxu0
    %v533 = vadd.f32 %v124, %v532
    %v534 = vpop.f32.mrb[0].mxu0
    %v535 = vadd.f32 %v128, %v534
    %536 = vmatprep.mubr.bf16.mxu0 0
    %537 = vmatmul.mubr.bf16.gmra.mrb[0].mxu0 %v170
    %v538 = vpop.f32.mrb[0].mxu0
    %v539 = vadd.f32 %v124, %v538
    %v540 = vpop.f32.mrb[0].mxu0
    %v541 = vadd.f32 %v128, %v540
    %v542 = vpop.f32.mrb[0].mxu0
    %v543 = vadd.f32 %v124, %v542
    %v544 = vpop.f32.mrb[0].mxu0
    %v545 = vadd.f32 %v128, %v544
    %546 = vmatprep.mubr.bf16.mxu0 0
    %547 = vmatmul.mubr.bf16.gmra.mrb[0].mxu0 %v171
    %v548 = vpop.f32.mrb[0].mxu0
    %v549 = vadd.f32 %v124, %v548
    %v550 = vpop.f32.mrb[0].mxu0
    %v551 = vadd.f32 %v128, %v550
    %v552 = vpop.f32.mrb[0].mxu0
    %v553 = vadd.f32 %v124, %v552
    %v554 = vpop.f32.mrb[0].mxu0
    %v555 = vadd.f32 %v128, %v554
    %556 = vmatprep.mubr.bf16.mxu0 0
    %557 = vmatmul.mubr.bf16.gmra.mrb[0].mxu0 %v172
    %v558 = vpop.f32.mrb[0].mxu0
    %v559 = vadd.f32 %v124, %v558
    %v560 = vpop.f32.mrb[0].mxu0
    %v561 = vadd.f32 %v128, %v560
    %v562 = vpop.f32.mrb[0].mxu0
    %v563 = vadd.f32 %v124, %v562
    %v564 = vpop.f32.mrb[0].mxu0
    %v565 = vadd.f32 %v128, %v564
    %566 = vdwg.mxu0
    %v567 = vmax.f32 %v376, 0.0
    %v568 = vmax.f32 %v378, 0.0
    %v569 = vmax.f32 %v489, 0.0
    %v570 = vmax.f32 %v491, 0.0
    %v571 = vmax.f32 %v380, 0.0
    %v572 = vmax.f32 %v382, 0.0
    %v573 = vmax.f32 %v493, 0.0
    %v574 = vmax.f32 %v495, 0.0
    %v575 = vmax.f32 %v386, 0.0
    %v576 = vmax.f32 %v388, 0.0
    %v577 = vmax.f32 %v499, 0.0
    %v578 = vmax.f32 %v501, 0.0
    %v579 = vmax.f32 %v390, 0.0
    %v580 = vmax.f32 %v392, 0.0
    %v581 = vmax.f32 %v503, 0.0
    %v582 = vmax.f32 %v505, 0.0
    %v583 = vmax.f32 %v396, 0.0
    %v584 = vmax.f32 %v398, 0.0
    %v585 = vmax.f32 %v509, 0.0
    %v586 = vmax.f32 %v511, 0.0
    %v587 = vmax.f32 %v400, 0.0
    %v588 = vmax.f32 %v402, 0.0
    %v589 = vmax.f32 %v513, 0.0
    %v590 = vmax.f32 %v515, 0.0
    %v591 = vmax.f32 %v406, 0.0
    %v592 = vmax.f32 %v408, 0.0
    %v593 = vmax.f32 %v519, 0.0
    %v594 = vmax.f32 %v521, 0.0
    %v595 = vmax.f32 %v410, 0.0
    %v596 = vmax.f32 %v412, 0.0
    %v597 = vmax.f32 %v523, 0.0
    %v598 = vmax.f32 %v525, 0.0
    %v599 = vmax.f32 %v416, 0.0
    %v600 = vmax.f32 %v418, 0.0
    %v601 = vmax.f32 %v529, 0.0
    %v602 = vmax.f32 %v531, 0.0
    %v603 = vmax.f32 %v420, 0.0
    %v604 = vmax.f32 %v422, 0.0
    %v605 = vmax.f32 %v533, 0.0
    %v606 = vmax.f32 %v535, 0.0
    %v607 = vmax.f32 %v426, 0.0
    %v608 = vmax.f32 %v428, 0.0
    %v609 = vmax.f32 %v539, 0.0
    %v610 = vmax.f32 %v541, 0.0
    %v611 = vmax.f32 %v430, 0.0
    %v612 = vmax.f32 %v432, 0.0
    %v613 = vmax.f32 %v543, 0.0
    %v614 = vmax.f32 %v545, 0.0
    %v615 = vmax.f32 %v436, 0.0
    %v616 = vmax.f32 %v438, 0.0
    %v617 = vmax.f32 %v549, 0.0
    %v618 = vmax.f32 %v551, 0.0
    %v619 = vmax.f32 %v440, 0.0
    %v620 = vmax.f32 %v442, 0.0
    %v621 = vmax.f32 %v553, 0.0
    %v622 = vmax.f32 %v555, 0.0
    %v623 = vmax.f32 %v446, 0.0
    %v624 = vmax.f32 %v448, 0.0
    %v625 = vmax.f32 %v559, 0.0
    %v626 = vmax.f32 %v561, 0.0
    %v627 = vmax.f32 %v450, 0.0
    %v628 = vmax.f32 %v452, 0.0
    %v629 = vmax.f32 %v563, 0.0
    %v630 = vmax.f32 %v565, 0.0
    %v631 = vpack.c.bf16 %v571, %v567
    %v632 = vpack.c.bf16 %v572, %v568
    %v633 = vpack.c.bf16 %v573, %v569
    %v634 = vpack.c.bf16 %v574, %v570
    %v635 = vpack.c.bf16 %v579, %v575
    %v636 = vpack.c.bf16 %v580, %v576
    %v637 = vpack.c.bf16 %v581, %v577
    %v638 = vpack.c.bf16 %v582, %v578
    %v639 = vpack.c.bf16 %v587, %v583
    %v640 = vpack.c.bf16 %v588, %v584
    %v641 = vpack.c.bf16 %v589, %v585
    %v642 = vpack.c.bf16 %v590, %v586
    %v643 = vpack.c.bf16 %v595, %v591
    %v644 = vpack.c.bf16 %v596, %v592
    %v645 = vpack.c.bf16 %v597, %v593
    %v646 = vpack.c.bf16 %v598, %v594
    %v647 = vpack.c.bf16 %v603, %v599
    %v648 = vpack.c.bf16 %v604, %v600
    %v649 = vpack.c.bf16 %v605, %v601
    %v650 = vpack.c.bf16 %v606, %v602
    %v651 = vpack.c.bf16 %v611, %v607
    %v652 = vpack.c.bf16 %v612, %v608
    %v653 = vpack.c.bf16 %v613, %v609
    %v654 = vpack.c.bf16 %v614, %v610
    %v655 = vpack.c.bf16 %v619, %v615
    %v656 = vpack.c.bf16 %v620, %v616
    %v657 = vpack.c.bf16 %v621, %v617
    %v658 = vpack.c.bf16 %v622, %v618
    %v659 = vpack.c.bf16 %v627, %v623
    %v660 = vpack.c.bf16 %v628, %v624
    %v661 = vpack.c.bf16 %v629, %v625
    %v662 = vpack.c.bf16 %v630, %v626
    %v663 = vld [vmem:[#allocation7] sm:$0xf]
    %v664 = vld [vmem:[#allocation7 + $0x4] sm:$0xf]
    %v665 = vld [vmem:[#allocation7 + $0x8] sm:$0xf]
    %v666 = vld [vmem:[#allocation7 + $0xc] sm:$0xf]
    %v667 = vld [vmem:[#allocation7 + $0x10] sm:$0xf]
    %v668 = vld [vmem:[#allocation7 + $0x14] sm:$0xf]
    %v669 = vld [vmem:[#allocation7 + $0x18] sm:$0xf]
    %v670 = vld [vmem:[#allocation7 + $0x1c] sm:$0xf]
    %v671 = vld [vmem:[#allocation7 + $0x20] sm:$0xf]
    %v672 = vld [vmem:[#allocation7 + $0x24] sm:$0xf]
    %v673 = vld [vmem:[#allocation7 + $0x28] sm:$0xf]
    %v674 = vld [vmem:[#allocation7 + $0x2c] sm:$0xf]
    %v675 = vld [vmem:[#allocation7 + $0x30] sm:$0xf]
    %v676 = vld [vmem:[#allocation7 + $0x34] sm:$0xf]
    %v677 = vld [vmem:[#allocation7 + $0x38] sm:$0xf]
    %v678 = vld [vmem:[#allocation7 + $0x3c] sm:$0xf]
    %v679 = vld [vmem:[#allocation7 + $0x40] sm:$0xf]
    %v680 = vld [vmem:[#allocation7 + $0x44] sm:$0xf]
    %v681 = vld [vmem:[#allocation7 + $0x48] sm:$0xf]
    %v682 = vld [vmem:[#allocation7 + $0x4c] sm:$0xf]
    %v683 = vld [vmem:[#allocation7 + $0x50] sm:$0xf]
    %v684 = vld [vmem:[#allocation7 + $0x54] sm:$0xf]
    %v685 = vld [vmem:[#allocation7 + $0x58] sm:$0xf]
    %v686 = vld [vmem:[#allocation7 + $0x5c] sm:$0xf]
    %v687 = vld [vmem:[#allocation7 + $0x60] sm:$0xf]
    %v688 = vld [vmem:[#allocation7 + $0x64] sm:$0xf]
    %v689 = vld [vmem:[#allocation7 + $0x68] sm:$0xf]
    %v690 = vld [vmem:[#allocation7 + $0x6c] sm:$0xf]
    %v691 = vld [vmem:[#allocation7 + $0x70] sm:$0xf]
    %v692 = vld [vmem:[#allocation7 + $0x74] sm:$0xf]
    %v693 = vld [vmem:[#allocation7 + $0x78] sm:$0xf]
    %v694 = vld [vmem:[#allocation7 + $0x7c] sm:$0xf]
    %v695 = vld [vmem:[#allocation7 + $0x80] sm:$0xf]
    %v696 = vld [vmem:[#allocation7 + $0x84] sm:$0xf]
    %v697 = vld [vmem:[#allocation7 + $0x88] sm:$0xf]
    %v698 = vld [vmem:[#allocation7 + $0x8c] sm:$0xf]
    %v699 = vld [vmem:[#allocation7 + $0x90] sm:$0xf]
    %v700 = vld [vmem:[#allocation7 + $0x94] sm:$0xf]
    %v701 = vld [vmem:[#allocation7 + $0x98] sm:$0xf]
    %v702 = vld [vmem:[#allocation7 + $0x9c] sm:$0xf]
    %v703 = vld [vmem:[#allocation7 + $0xa0] sm:$0xf]
    %v704 = vld [vmem:[#allocation7 + $0xa4] sm:$0xf]
    %v705 = vld [vmem:[#allocation7 + $0xa8] sm:$0xf]
    %v706 = vld [vmem:[#allocation7 + $0xac] sm:$0xf]
    %v707 = vld [vmem:[#allocation7 + $0xb0] sm:$0xf]
    %v708 = vld [vmem:[#allocation7 + $0xb4] sm:$0xf]
    %v709 = vld [vmem:[#allocation7 + $0xb8] sm:$0xf]
    %v710 = vld [vmem:[#allocation7 + $0xbc] sm:$0xf]
    %v711 = vld [vmem:[#allocation7 + $0xc0] sm:$0xf]
    %v712 = vld [vmem:[#allocation7 + $0xc4] sm:$0xf]
    %v713 = vld [vmem:[#allocation7 + $0xc8] sm:$0xf]
    %v714 = vld [vmem:[#allocation7 + $0xcc] sm:$0xf]
    %v715 = vld [vmem:[#allocation7 + $0xd0] sm:$0xf]
    %v716 = vld [vmem:[#allocation7 + $0xd4] sm:$0xf]
    %v717 = vld [vmem:[#allocation7 + $0xd8] sm:$0xf]
    %v718 = vld [vmem:[#allocation7 + $0xdc] sm:$0xf]
    %v719 = vld [vmem:[#allocation7 + $0xe0] sm:$0xf]
    %v720 = vld [vmem:[#allocation7 + $0xe4] sm:$0xf]
    %v721 = vld [vmem:[#allocation7 + $0xe8] sm:$0xf]
    %v722 = vld [vmem:[#allocation7 + $0xec] sm:$0xf]
    %v723 = vld [vmem:[#allocation7 + $0xf0] sm:$0xf]
    %v724 = vld [vmem:[#allocation7 + $0xf4] sm:$0xf]
    %v725 = vld [vmem:[#allocation7 + $0xf8] sm:$0xf]
    %v726 = vld [vmem:[#allocation7 + $0xfc] sm:$0xf]
    %v727 = vld [vmem:[%s4] sm:$0x1]
    %v729 = vlaneseq
    %v730 = vshrl.u32 %v729, 7
    %v731 = vsub.s32 0, %v730
    %v732 = vrot.slane %v727, %v731
    %v798 = vunpack.c.l.b16 %v663
    %v799 = vunpack.c.l.b16 %v664
    %v800 = vunpack.c.l.b16 %v665
    %v801 = vunpack.c.l.b16 %v666
    %v802 = vunpack.c.l.b16 %v667
    %v803 = vunpack.c.l.b16 %v668
    %v804 = vunpack.c.l.b16 %v669
    %v805 = vunpack.c.l.b16 %v670
    %v806 = vunpack.c.l.b16 %v671
    %v807 = vunpack.c.l.b16 %v672
    %v808 = vunpack.c.l.b16 %v673
    %v809 = vunpack.c.l.b16 %v674
    %v810 = vunpack.c.l.b16 %v675
    %v811 = vunpack.c.l.b16 %v676
    %v812 = vunpack.c.l.b16 %v677
    %v813 = vunpack.c.l.b16 %v678
    %v814 = vunpack.c.l.b16 %v679
    %v815 = vunpack.c.l.b16 %v680
    %v816 = vunpack.c.l.b16 %v681
    %v817 = vunpack.c.l.b16 %v682
    %v818 = vunpack.c.l.b16 %v683
    %v819 = vunpack.c.l.b16 %v684
    %v820 = vunpack.c.l.b16 %v685
    %v821 = vunpack.c.l.b16 %v686
    %v822 = vunpack.c.l.b16 %v687
    %v823 = vunpack.c.l.b16 %v688
    %v824 = vunpack.c.l.b16 %v689
    %v825 = vunpack.c.l.b16 %v690
    %v826 = vunpack.c.l.b16 %v691
    %v827 = vunpack.c.l.b16 %v692
    %v828 = vunpack.c.l.b16 %v693
    %v829 = vunpack.c.l.b16 %v694
    %v830 = vunpack.c.l.b16 %v695
    %v831 = vunpack.c.l.b16 %v696
    %v832 = vunpack.c.l.b16 %v697
    %v833 = vunpack.c.l.b16 %v698
    %v834 = vunpack.c.l.b16 %v699
    %v835 = vunpack.c.l.b16 %v700
    %v836 = vunpack.c.l.b16 %v701
    %v837 = vunpack.c.l.b16 %v702
    %v838 = vunpack.c.l.b16 %v703
    %v839 = vunpack.c.l.b16 %v704
    %v840 = vunpack.c.l.b16 %v705
    %v841 = vunpack.c.l.b16 %v706
    %v842 = vunpack.c.l.b16 %v707
    %v843 = vunpack.c.l.b16 %v708
    %v844 = vunpack.c.l.b16 %v709
    %v845 = vunpack.c.l.b16 %v710
    %v846 = vunpack.c.l.b16 %v711
    %v847 = vunpack.c.l.b16 %v712
    %v848 = vunpack.c.l.b16 %v713
    %v849 = vunpack.c.l.b16 %v714
    %v850 = vunpack.c.l.b16 %v715
    %v851 = vunpack.c.l.b16 %v716
    %v852 = vunpack.c.l.b16 %v717
    %v853 = vunpack.c.l.b16 %v718
    %v854 = vunpack.c.l.b16 %v719
    %v855 = vunpack.c.l.b16 %v720
    %v856 = vunpack.c.l.b16 %v721
    %v857 = vunpack.c.l.b16 %v722
    %v858 = vunpack.c.l.b16 %v723
    %v859 = vunpack.c.l.b16 %v724
    %v860 = vunpack.c.l.b16 %v725
    %v861 = vunpack.c.l.b16 %v726
    %v862 = vpack.c.b16 %v799, %v798
    %v863 = vpack.c.b16 %v801, %v800
    %v864 = vpack.c.b16 %v803, %v802
    %v865 = vpack.c.b16 %v805, %v804
    %v866 = vpack.c.b16 %v807, %v806
    %v867 = vpack.c.b16 %v809, %v808
    %v868 = vpack.c.b16 %v811, %v810
    %v869 = vpack.c.b16 %v813, %v812
    %v870 = vpack.c.b16 %v815, %v814
    %v871 = vpack.c.b16 %v817, %v816
    %v872 = vpack.c.b16 %v819, %v818
    %v873 = vpack.c.b16 %v821, %v820
    %v874 = vpack.c.b16 %v823, %v822
    %v875 = vpack.c.b16 %v825, %v824
    %v876 = vpack.c.b16 %v827, %v826
    %v877 = vpack.c.b16 %v829, %v828
    %v878 = vpack.c.b16 %v831, %v830
    %v879 = vpack.c.b16 %v833, %v832
    %v880 = vpack.c.b16 %v835, %v834
    %v881 = vpack.c.b16 %v837, %v836
    %v882 = vpack.c.b16 %v839, %v838
    %v883 = vpack.c.b16 %v841, %v840
    %v884 = vpack.c.b16 %v843, %v842
    %v885 = vpack.c.b16 %v845, %v844
    %v886 = vpack.c.b16 %v847, %v846
    %v887 = vpack.c.b16 %v849, %v848
    %v888 = vpack.c.b16 %v851, %v850
    %v889 = vpack.c.b16 %v853, %v852
    %v890 = vpack.c.b16 %v855, %v854
    %v891 = vpack.c.b16 %v857, %v856
    %v892 = vpack.c.b16 %v859, %v858
    %v893 = vpack.c.b16 %v861, %v860
    %926 = vmatprep.subr.bf16.mxu0 0
    %927 = vmatpush1.bf16.msra.mxu0 %v862
    %928 = vmatprep.subr.bf16.mxu0 0
    %929 = vmatpush1.bf16.msra.mxu0 %v863
    %930 = vmatprep.subr.bf16.mxu0 0
    %931 = vmatpush1.bf16.msra.mxu0 %v864
    %932 = vmatprep.subr.bf16.mxu0 0
    %933 = vmatpush1.bf16.msra.mxu0 %v865
    %934 = vmatprep.subr.bf16.mxu0 0
    %935 = vmatpush1.bf16.msra.mxu0 %v866
    %936 = vmatprep.subr.bf16.mxu0 0
    %937 = vmatpush1.bf16.msra.mxu0 %v867
    %938 = vmatprep.subr.bf16.mxu0 0
    %939 = vmatpush1.bf16.msra.mxu0 %v868
    %940 = vmatprep.subr.bf16.mxu0 0
    %941 = vmatpush1.bf16.msra.mxu0 %v869
    %942 = vmatprep.subr.bf16.mxu0 0
    %943 = vmatpush1.bf16.msra.mxu0 %v870
    %944 = vmatprep.subr.bf16.mxu0 0
    %945 = vmatpush1.bf16.msra.mxu0 %v871
    %946 = vmatprep.subr.bf16.mxu0 0
    %947 = vmatpush1.bf16.msra.mxu0 %v872
    %948 = vmatprep.subr.bf16.mxu0 0
    %949 = vmatpush1.bf16.msra.mxu0 %v873
    %950 = vmatprep.subr.bf16.mxu0 0
    %951 = vmatpush1.bf16.msra.mxu0 %v874
    %952 = vmatprep.subr.bf16.mxu0 0
    %953 = vmatpush1.bf16.msra.mxu0 %v875
    %954 = vmatprep.subr.bf16.mxu0 0
    %955 = vmatpush1.bf16.msra.mxu0 %v876
    %956 = vmatprep.subr.bf16.mxu0 0
    %957 = vmatpush1.bf16.msra.mxu0 %v877
    %958 = vmatprep.mubr.bf16.mxu0 %v632
    %959 = vmatmul.mubr.bf16.gmra.mrb[0].mxu0 %v631
    %v960 = vpop.f32.mrb[0].mxu0
    %v961 = vadd.f32 %v732, %v960
    %v962 = vpop.f32.mrb[0].mxu0
    %v963 = vpop.f32.mrb[0].mxu0
    %v964 = vadd.f32 %v732, %v963
    %v965 = vpop.f32.mrb[0].mxu0
    %966 = vmatprep.mubr.bf16.mxu0 %v636
    %967 = vmatmul.mubr.bf16.gmra.mrb[0].mxu0 %v635
    %v968 = vpop.f32.mrb[0].mxu0
    %v969 = vadd.f32 %v732, %v968
    %v970 = vpop.f32.mrb[0].mxu0
    %v971 = vpop.f32.mrb[0].mxu0
    %v972 = vadd.f32 %v732, %v971
    %v973 = vpop.f32.mrb[0].mxu0
    %974 = vmatprep.mubr.bf16.mxu0 %v640
    %975 = vmatmul.mubr.bf16.gmra.mrb[0].mxu0 %v639
    %v976 = vpop.f32.mrb[0].mxu0
    %v977 = vadd.f32 %v732, %v976
    %v978 = vpop.f32.mrb[0].mxu0
    %v979 = vpop.f32.mrb[0].mxu0
    %v980 = vadd.f32 %v732, %v979
    %v981 = vpop.f32.mrb[0].mxu0
    %982 = vmatprep.mubr.bf16.mxu0 %v644
    %983 = vmatmul.mubr.bf16.gmra.mrb[0].mxu0 %v643
    %v984 = vpop.f32.mrb[0].mxu0
    %v985 = vadd.f32 %v732, %v984
    %v986 = vpop.f32.mrb[0].mxu0
    %v987 = vpop.f32.mrb[0].mxu0
    %v988 = vadd.f32 %v732, %v987
    %v989 = vpop.f32.mrb[0].mxu0
    %990 = vmatprep.mubr.bf16.mxu0 %v648
    %991 = vmatmul.mubr.bf16.gmra.mrb[0].mxu0 %v647
    %v992 = vpop.f32.mrb[0].mxu0
    %v993 = vadd.f32 %v732, %v992
    %v994 = vpop.f32.mrb[0].mxu0
    %v995 = vpop.f32.mrb[0].mxu0
    %v996 = vadd.f32 %v732, %v995
    %v997 = vpop.f32.mrb[0].mxu0
    %998 = vmatprep.mubr.bf16.mxu0 %v652
    %999 = vmatmul.mubr.bf16.gmra.mrb[0].mxu0 %v651
    %v1000 = vpop.f32.mrb[0].mxu0
    %v1001 = vadd.f32 %v732, %v1000
    %v1002 = vpop.f32.mrb[0].mxu0
    %v1003 = vpop.f32.mrb[0].mxu0
    %v1004 = vadd.f32 %v732, %v1003
    %v1005 = vpop.f32.mrb[0].mxu0
    %1006 = vmatprep.mubr.bf16.mxu0 %v656
    %1007 = vmatmul.mubr.bf16.gmra.mrb[0].mxu0 %v655
    %v1008 = vpop.f32.mrb[0].mxu0
    %v1009 = vadd.f32 %v732, %v1008
    %v1010 = vpop.f32.mrb[0].mxu0
    %v1011 = vpop.f32.mrb[0].mxu0
    %v1012 = vadd.f32 %v732, %v1011
    %v1013 = vpop.f32.mrb[0].mxu0
    %1014 = vmatprep.mubr.bf16.mxu0 %v660
    %1015 = vmatmul.mubr.bf16.gmra.mrb[0].mxu0 %v659
    %v1016 = vpop.f32.mrb[0].mxu0
    %v1017 = vadd.f32 %v732, %v1016
    %v1018 = vpop.f32.mrb[0].mxu0
    %v1019 = vpop.f32.mrb[0].mxu0
    %v1020 = vadd.f32 %v732, %v1019
    %v1021 = vpop.f32.mrb[0].mxu0
    %1022 = vdwg.mxu0
    %1023 = vmatprep.subr.bf16.mxu0 0
    %1024 = vmatpush1.bf16.msra.mxu0 %v878
    %1025 = vmatprep.subr.bf16.mxu0 0
    %1026 = vmatpush1.bf16.msra.mxu0 %v879
    %1027 = vmatprep.subr.bf16.mxu0 0
    %1028 = vmatpush1.bf16.msra.mxu0 %v880
    %1029 = vmatprep.subr.bf16.mxu0 0
    %1030 = vmatpush1.bf16.msra.mxu0 %v881
    %1031 = vmatprep.subr.bf16.mxu0 0
    %1032 = vmatpush1.bf16.msra.mxu0 %v882
    %1033 = vmatprep.subr.bf16.mxu0 0
    %1034 = vmatpush1.bf16.msra.mxu0 %v883
    %1035 = vmatprep.subr.bf16.mxu0 0
    %1036 = vmatpush1.bf16.msra.mxu0 %v884
    %1037 = vmatprep.subr.bf16.mxu0 0
    %1038 = vmatpush1.bf16.msra.mxu0 %v885
    %1039 = vmatprep.subr.bf16.mxu0 0
    %1040 = vmatpush1.bf16.msra.mxu0 %v886
    %1041 = vmatprep.subr.bf16.mxu0 0
    %1042 = vmatpush1.bf16.msra.mxu0 %v887
    %1043 = vmatprep.subr.bf16.mxu0 0
    %1044 = vmatpush1.bf16.msra.mxu0 %v888
    %1045 = vmatprep.subr.bf16.mxu0 0
    %1046 = vmatpush1.bf16.msra.mxu0 %v889
    %1047 = vmatprep.subr.bf16.mxu0 0
    %1048 = vmatpush1.bf16.msra.mxu0 %v890
    %1049 = vmatprep.subr.bf16.mxu0 0
    %1050 = vmatpush1.bf16.msra.mxu0 %v891
    %1051 = vmatprep.subr.bf16.mxu0 0
    %1052 = vmatpush1.bf16.msra.mxu0 %v892
    %1053 = vmatprep.subr.bf16.mxu0 0
    %1054 = vmatpush1.bf16.msra.mxu0 %v893
    %1055 = vmatprep.mubr.bf16.mxu0 %v634
    %1056 = vmatmul.mubr.bf16.gmra.mrb[0].mxu0 %v633
    %v1057 = vpop.f32.mrb[0].mxu0
    %v1058 = vadd.f32 %v961, %v1057
    %v1059 = vpop.f32.mrb[0].mxu0
    %v1060 = vpop.f32.mrb[0].mxu0
    %v1061 = vadd.f32 %v964, %v1060
    %v1062 = vpop.f32.mrb[0].mxu0
    %1063 = vmatprep.mubr.bf16.mxu0 %v638
    %1064 = vmatmul.mubr.bf16.gmra.mrb[0].mxu0 %v637
    %v1065 = vpop.f32.mrb[0].mxu0
    %v1066 = vadd.f32 %v969, %v1065
    %v1067 = vpop.f32.mrb[0].mxu0
    %v1068 = vpop.f32.mrb[0].mxu0
    %v1069 = vadd.f32 %v972, %v1068
    %v1070 = vpop.f32.mrb[0].mxu0
    %1071 = vmatprep.mubr.bf16.mxu0 %v642
    %1072 = vmatmul.mubr.bf16.gmra.mrb[0].mxu0 %v641
    %v1073 = vpop.f32.mrb[0].mxu0
    %v1074 = vadd.f32 %v977, %v1073
    %v1075 = vpop.f32.mrb[0].mxu0
    %v1076 = vpop.f32.mrb[0].mxu0
    %v1077 = vadd.f32 %v980, %v1076
    %v1078 = vpop.f32.mrb[0].mxu0
    %1079 = vmatprep.mubr.bf16.mxu0 %v646
    %1080 = vmatmul.mubr.bf16.gmra.mrb[0].mxu0 %v645
    %v1081 = vpop.f32.mrb[0].mxu0
    %v1082 = vadd.f32 %v985, %v1081
    %v1083 = vpop.f32.mrb[0].mxu0
    %v1084 = vpop.f32.mrb[0].mxu0
    %v1085 = vadd.f32 %v988, %v1084
    %v1086 = vpop.f32.mrb[0].mxu0
    %1087 = vmatprep.mubr.bf16.mxu0 %v650
    %1088 = vmatmul.mubr.bf16.gmra.mrb[0].mxu0 %v649
    %v1089 = vpop.f32.mrb[0].mxu0
    %v1090 = vadd.f32 %v993, %v1089
    %v1091 = vpop.f32.mrb[0].mxu0
    %v1092 = vpop.f32.mrb[0].mxu0
    %v1093 = vadd.f32 %v996, %v1092
    %v1094 = vpop.f32.mrb[0].mxu0
    %1095 = vmatprep.mubr.bf16.mxu0 %v654
    %1096 = vmatmul.mubr.bf16.gmra.mrb[0].mxu0 %v653
    %v1097 = vpop.f32.mrb[0].mxu0
    %v1098 = vadd.f32 %v1001, %v1097
    %v1099 = vpop.f32.mrb[0].mxu0
    %v1100 = vpop.f32.mrb[0].mxu0
    %v1101 = vadd.f32 %v1004, %v1100
    %v1102 = vpop.f32.mrb[0].mxu0
    %1103 = vmatprep.mubr.bf16.mxu0 %v658
    %1104 = vmatmul.mubr.bf16.gmra.mrb[0].mxu0 %v657
    %v1105 = vpop.f32.mrb[0].mxu0
    %v1106 = vadd.f32 %v1009, %v1105
    %v1107 = vpop.f32.mrb[0].mxu0
    %v1108 = vpop.f32.mrb[0].mxu0
    %v1109 = vadd.f32 %v1012, %v1108
    %v1110 = vpop.f32.mrb[0].mxu0
    %1111 = vmatprep.mubr.bf16.mxu0 %v662
    %1112 = vmatmul.mubr.bf16.gmra.mrb[0].mxu0 %v661
    %v1113 = vpop.f32.mrb[0].mxu0
    %v1114 = vadd.f32 %v1017, %v1113
    %v1115 = vpop.f32.mrb[0].mxu0
    %v1116 = vpop.f32.mrb[0].mxu0
    %v1117 = vadd.f32 %v1020, %v1116
    %v1118 = vpop.f32.mrb[0].mxu0
    %1119 = vdwg.mxu0
    %1120 = vst [vmem:[#allocation8] sm:$0xff] %v1058
    %1121 = vst [vmem:[#allocation8 + $0x8] sm:$0xff] %v1061
    %1122 = vst [vmem:[#allocation8 + $0x10] sm:$0xff] %v1066
    %1123 = vst [vmem:[#allocation8 + $0x18] sm:$0xff] %v1069
    %1124 = vst [vmem:[#allocation8 + $0x20] sm:$0xff] %v1074
    %1125 = vst [vmem:[#allocation8 + $0x28] sm:$0xff] %v1077
    %1126 = vst [vmem:[#allocation8 + $0x30] sm:$0xff] %v1082
    %1127 = vst [vmem:[#allocation8 + $0x38] sm:$0xff] %v1085
    %1128 = vst [vmem:[#allocation8 + $0x40] sm:$0xff] %v1090
    %1129 = vst [vmem:[#allocation8 + $0x48] sm:$0xff] %v1093
    %1130 = vst [vmem:[#allocation8 + $0x50] sm:$0xff] %v1098
    %1131 = vst [vmem:[#allocation8 + $0x58] sm:$0xff] %v1101
    %1132 = vst [vmem:[#allocation8 + $0x60] sm:$0xff] %v1106
    %1133 = vst [vmem:[#allocation8 + $0x68] sm:$0xff] %v1109
    %1134 = vst [vmem:[#allocation8 + $0x70] sm:$0xff] %v1114
    %1135 = vst [vmem:[#allocation8 + $0x78] sm:$0xff] %v1117
    // Predicated region
    $region34: #{tpu_custom_call.1} parent=1 // pred_check
      _
    $region35: #{tpu_custom_call.1} parent=1 // pred_check_branch
      %1137 = sbr.rel (0) target = $region37
    $region36: #{tpu_custom_call.1} parent=1 // pred_region
      %s1139 = ssub.s32 2048, 2048
      %1140 = vsyncadd [#allocation4], %s1139
      %s1141 = sshll.u32 [#allocation8], 4
      %s1142 = int_to_ptr.vmem [resolvable:$true] %s1141
      %1147 = dma.vmem_to_hbm [thread:$0]  %s1142, 2048, %s5, [#allocation4], 128, 128, 8
    $region37: #{tpu_custom_call.1} parent=1 // pred_fallthru
      _
    // Predicated region
    $region38: #{tpu_custom_call.1} parent=1 // pred_check
      _
    $region39: #{tpu_custom_call.1} parent=1 // pred_check_branch
      %1149 = sbr.rel (0) target = $region41
    $region40: #{tpu_custom_call.1} parent=1 // pred_region
      %1150 = dma.done [#allocation4], 2048
    $region41: #{tpu_custom_call.1} parent=1 // pred_fallthru
      _
    %1151 = vsyncpa [#allocation3], 1
    %1152 = vsyncpa [#allocation6], 1
    %1153 = vsyncpa [#allocation4], 1

</llo_original>
